<compile_context>
chip_gen: v7x
topology: tpu7x:2x2x1
jax: 0.10.0
libtpu: 0.0.40
codegen_flags: <defaults>
</compile_context>

<pallas_src>
import jax
import jax.numpy as jnp
from jax import lax
from jax.experimental import pallas as pl
from jax.experimental.pallas import tpu as pltpu


# --------------------------------------------------------------------------
# Kernel
# --------------------------------------------------------------------------
def _linear_relu_kernel(x_ref, w_ref, b_ref, o_ref):
    # x_ref : (Bp, K)   activations (block index never changes -> resident)
    # w_ref : (TN, K)   Linear weight tile in its native [out, in] layout
    # b_ref : (1, TN)   bias tile (f32)
    # o_ref : (Bp, TN)  lane-dense output tile (TN % 128 == 0, Bp % 8 == 0)
    #
    # One MXU dot per grid step.  Contracting the LAST dim of both operands
    # keeps the weight in its HBM layout; the "transpose" happens in VMEM/MXU,
    # not as an HBM round trip in the wrapper.
    acc = lax.dot_general(
        x_ref[...], w_ref[...],
        dimension_numbers=(((1,), (1,)), ((), ())),
        preferred_element_type=jnp.float32)
    acc = acc + b_ref[...]                       # f32 epilogue (v5e: no bf16 VPU)
    o_ref[...] = jnp.maximum(acc, 0.0).astype(o_ref.dtype)


# --------------------------------------------------------------------------
# Tiling / VMEM planning
# --------------------------------------------------------------------------
_VMEM_BUDGET = 20 * 1024 * 1024    # headroom inside v7x's 32 MiB scoped default


def _round_up(x, m):
    return -(-x // m) * m


def _vmem_bytes(tn, latent_dim, batch, w_bytes, o_bytes):
    # Weight / output / bias tiles are double-buffered by the auto-pipeline;
    # x is counted once (its block index never changes; see Buffered(1) below).
    return (2 * tn * latent_dim * w_bytes        # weight tile
            + 2 * batch * tn * o_bytes           # output tile
            + 2 * tn * 4                         # bias tile
            + batch * latent_dim * w_bytes)      # resident activations


def _pick_tile_n(n_pad, latent_dim, batch, w_bytes, o_bytes):
    """Largest lane-dense output tile that fits the VMEM budget."""
    # Tiny weights (< 1 MiB total): a single grid step -- per-step pipeline
    # overhead (~0.35 us) would dominate tiny DMA bursts.
    if (n_pad * latent_dim * w_bytes <= (1 << 20)
            and _vmem_bytes(n_pad, latent_dim, batch, w_bytes, o_bytes) <= _VMEM_BUDGET):
        return n_pad
    # Otherwise: largest lane-dense tile that divides n_pad, gives >= 2 grid
    # steps (both v7x TensorCores busy on disjoint halves of W) and fits the
    # budget; >= 512 KiB weight bursts keep us near the HBM roofline.
    for tn in (2048, 1024, 512, 256, 128):
        if (n_pad % tn == 0 and n_pad // tn >= 2
                and _vmem_bytes(tn, latent_dim, batch, w_bytes, o_bytes) <= _VMEM_BUDGET):
            return tn
    return 128


# --------------------------------------------------------------------------
# Forward wrapper (== BackBoneMapping.forward)
# --------------------------------------------------------------------------
def backbone_mapping_forward(x, weight, bias, backbone_channel, feature_res_h,
                             feature_res_w, *, compute_dtype=None):
    """Equivalent of BackBoneMapping(...).forward(x).

    x      : [B, latent_dim]
    weight : [C*H*W, latent_dim]  (PyTorch nn.Linear weight, native layout)
    bias   : [C*H*W]
    compute_dtype : dtype fed to the MXU (bf16 recommended on v6e/v7x);
                    accumulation / epilogue are always f32.
    returns: [B, C, H, W]
    """
    B, latent_dim = x.shape
    out_features = weight.shape[0]
    assert out_features == backbone_channel * feature_res_h * feature_res_w
    out_dtype = x.dtype
    compute_dtype = out_dtype if compute_dtype is None else compute_dtype

    # ---- dtype plumbing; NO weight transpose (weight stays [N, K] in HBM) ----
    # TODO(synk): store the weight parameter directly in compute_dtype at
    # parameter-load time so this cast is not on the per-call hot path.
    x_c = x.astype(compute_dtype)
    w_c = weight.astype(compute_dtype)
    b2d = bias.reshape(1, out_features).astype(jnp.float32)

    # Lane-density guard: pad out-features to a multiple of 128 so every store
    # is an unmasked full-width vst; sliced off again before the reshape.
    n_pad = _round_up(out_features, 128)
    if n_pad != out_features:
        # TODO(synk): fold this zero-pad into parameter load so it isn't per-call.
        w_c = jnp.pad(w_c, ((0, n_pad - out_features), (0, 0)))
        b2d = jnp.pad(b2d, ((0, 0), (0, n_pad - out_features)))

    # Sublane guard: pad batch to a multiple of 8 so the (B, TN) output tile
    # fills whole sublanes (unmasked stores on v5e's single vst slot).
    b_pad = _round_up(B, 8)
    if b_pad != B:
        x_c = jnp.pad(x_c, ((0, b_pad - B), (0, 0)))

    w_bytes = jnp.dtype(compute_dtype).itemsize
    o_bytes = jnp.dtype(out_dtype).itemsize
    tn = _pick_tile_n(n_pad, latent_dim, b_pad, w_bytes, o_bytes)
    grid = (n_pad // tn,)

    # x's block index never changes across the grid, so there is nothing to
    # pipeline: single-buffer it once it is large enough to matter for v7x's
    # 32 MiB scoped VMEM (at tiny sizes the default double buffer is free).
    x_spec_kwargs = {}
    if b_pad * latent_dim * w_bytes >= (2 << 20) and hasattr(pl, "Buffered"):
        x_spec_kwargs["pipeline_mode"] = pl.Buffered(1)

    in_specs = [
        pl.BlockSpec((b_pad, latent_dim), lambda j: (0, 0), **x_spec_kwargs),
        pl.BlockSpec((tn, latent_dim), lambda j: (j, 0)),   # weight tile, native layout
        pl.BlockSpec((1, tn), lambda j: (0, j)),            # bias tile
    ]
    out_specs = pl.BlockSpec((b_pad, tn), lambda j: (0, j))

    cost = pl.CostEstimate(
        flops=2 * b_pad * latent_dim * n_pad,
        transcendentals=0,
        bytes_accessed=(x_c.size * w_bytes + w_c.size * w_bytes
                        + b2d.size * 4 + b_pad * n_pad * o_bytes))

    cp_kwargs = dict(dimension_semantics=("parallel",))
    vmem_needed = _vmem_bytes(tn, latent_dim, b_pad, w_bytes, o_bytes)
    if vmem_needed > 16 * 1024 * 1024:          # above v5e's scoped default
        cp_kwargs["vmem_limit_bytes"] = int(vmem_needed * 5 // 4)

    y = pl.pallas_call(
        _linear_relu_kernel,
        out_shape=jax.ShapeDtypeStruct((b_pad, n_pad), out_dtype),
        grid=grid,
        in_specs=in_specs,
        out_specs=out_specs,
        compiler_params=pltpu.CompilerParams(**cp_kwargs),
        cost_estimate=cost,
    )(x_c, w_c, b2d)

    # Drop padding, then Unflatten(1, (C, H, W)) as a zero-cost row-major reshape.
    y = y[:B, :out_features]
    return y.reshape(B, backbone_channel, feature_res_h, feature_res_w)


def _reference_forward(x, weight, bias, c, h, w):
    """Pure-JAX reference: ReLU(x @ W^T + b) -> reshape."""
    y = jnp.maximum(x @ weight.T + bias[None, :], 0.0)
    return y.reshape(x.shape[0], c, h, w)


if __name__ == "__main__":
    # Small deterministic setup consistent with
    # BackBoneMapping(latent_dim=32, backbone_channel=4,
    #                 feature_res_h=8, feature_res_w=8), batch=2.
    B, LATENT, C, H, W = 2, 32, 4, 8, 8
    OUT = C * H * W                                       # 256 (lane-dense)

    key = jax.random.PRNGKey(0)
    kx, kw, kb = jax.random.split(key, 3)
    x = jax.random.normal(kx, (B, LATENT), dtype=jnp.float32)
    bound = 1.0 / (LATENT ** 0.5)                         # nn.Linear init scale
    weight = jax.random.uniform(kw, (OUT, LATENT), minval=-bound, maxval=bound,
                                dtype=jnp.float32)
    bias = jax.random.uniform(kb, (OUT,), minval=-bound, maxval=bound,
                              dtype=jnp.float32)

    ref = jax.block_until_ready(_reference_forward(x, weight, bias, C, H, W))

    # f32 path: tight check against the pure-JAX reference.
    out = jax.block_until_ready(backbone_mapping_forward(x, weight, bias, C, H, W))
    assert out.shape == (B, C, H, W), out.shape
    assert jnp.allclose(out, ref, atol=1e-4, rtol=1e-4), \
        float(jnp.max(jnp.abs(out - ref)))

    # bf16 compute path (production choice on v6e/v7x): looser tolerance for
    # the bf16 mantissa; accumulation + bias/ReLU epilogue stay f32 in-kernel.
    out_bf16 = jax.block_until_ready(
        backbone_mapping_forward(x, weight, bias, C, H, W,
                                 compute_dtype=jnp.bfloat16))
    assert out_bf16.shape == (B, C, H, W), out_bf16.shape
    assert jnp.allclose(out_bf16, ref, atol=3e-2, rtol=3e-2), \
        float(jnp.max(jnp.abs(out_bf16 - ref)))

    print("KERNEL_OK")
</pallas_src>

<mosaic_0001>
module attributes {stable_mosaic.version = 11 : i64} {
  func.func @_linear_relu_kernel(%arg0: i32, %arg1: memref<8x32xf32, #tpu.memory_space<vmem>>, %arg2: memref<256x32xf32, #tpu.memory_space<vmem>>, %arg3: memref<1x256xf32, #tpu.memory_space<vmem>>, %arg4: memref<8x256xf32, #tpu.memory_space<vmem>>) attributes {dimension_semantics = [#tpu.dimension_semantics<parallel>], iteration_bounds = array<i64: 1>, scalar_prefetch = 0 : i64, scratch_operands = 0 : i64, tpu.core_type = #tpu.core_type<tc>, window_params = [{pipeline_mode = #tpu.pipeline_mode<synchronous>, transform_indices = @transform_0, window_bounds = array<i64: 8, 32>}, {transform_indices = @transform_1, window_bounds = array<i64: 256, 32>}, {transform_indices = @transform_2, window_bounds = array<i64: 1, 256>}, {transform_indices = @transform_3, window_bounds = array<i64: 8, 256>}]} {
    %c0 = arith.constant 0 : index
    %c0_0 = arith.constant 0 : index
    %0 = vector.load %arg1[%c0, %c0_0] : memref<8x32xf32, #tpu.memory_space<vmem>>, vector<8x32xf32>
    %c0_1 = arith.constant 0 : index
    %c0_2 = arith.constant 0 : index
    %1 = vector.load %arg2[%c0_1, %c0_2] : memref<256x32xf32, #tpu.memory_space<vmem>>, vector<256x32xf32>
    %cst = arith.constant dense<0.000000e+00> : vector<8x256xf32>
    %2 = tpu.matmul %0, %1, %cst {dimension_numbers = #tpu.dot_dimension_numbers<[1], [1], [0], [0], [0, 0, 1, 0], [], []>} : vector<8x32xf32>, vector<256x32xf32>, vector<8x256xf32> -> vector<8x256xf32>
    %c0_3 = arith.constant 0 : index
    %c0_4 = arith.constant 0 : index
    %3 = vector.load %arg3[%c0_3, %c0_4] : memref<1x256xf32, #tpu.memory_space<vmem>>, vector<1x256xf32>
    %4 = vector.broadcast %3 : vector<1x256xf32> to vector<8x256xf32>
    %5 = arith.addf %2, %4 : vector<8x256xf32>
    %cst_5 = arith.constant 0.000000e+00 : f32
    %6 = vector.broadcast %cst_5 : f32 to vector<8x256xf32>
    %7 = arith.maximumf %5, %6 : vector<8x256xf32>
    %c0_6 = arith.constant 0 : index
    %c0_7 = arith.constant 0 : index
    %8 = vector.load %arg4[%c0_6, %c0_7] : memref<8x256xf32, #tpu.memory_space<vmem>>, vector<8x256xf32>
    tpu.vector_store %arg4[%c0_6, %c0_7], %7 {strides = array<i32>} : memref<8x256xf32, #tpu.memory_space<vmem>>, vector<8x256xf32>,
    return
  }
  func.func @transform_0(%arg0: i32) -> (i32, i32) {
    %c0_i32 = arith.constant 0 : i32
    %c0_i32_0 = arith.constant 0 : i32
    %c0_i32_1 = arith.constant 0 : i32
    return %c0_i32, %c0_i32_0 : i32, i32
  }
  func.func @transform_1(%arg0: i32) -> (i32, i32) {
    %c0_i32 = arith.constant 0 : i32
    %c0_i32_0 = arith.constant 0 : i32
    return %arg0, %c0_i32 : i32, i32
  }
  func.func @transform_2(%arg0: i32) -> (i32, i32) {
    %c0_i32 = arith.constant 0 : i32
    %c0_i32_0 = arith.constant 0 : i32
    return %c0_i32, %arg0 : i32, i32
  }
  func.func @transform_3(%arg0: i32) -> (i32, i32) {
    %c0_i32 = arith.constant 0 : i32
    %c0_i32_0 = arith.constant 0 : i32
    return %c0_i32, %arg0 : i32, i32
  }
}

</mosaic_0001>

<llo_original>
// kernel: tpu_custom_call.1
$region0: #{tpu_custom_call.1}
  #allocation0 [shape = 'u32[]', space=smem, size = 0x4, offset = 0x4, fixed_abs, tag = 'smem constant byte address 0x4 - core index']
  #allocation1 [shape = 'u32[144,128]{1,0:T(1,128)}', space=vmem, size = 0x12000, scoped, tag = 'internal scratch']
  %s0 = inlined_call_operand.vmem [shape: f32[8,32], index: 0, kind: input, shape index: {}]
  %s1 = inlined_call_operand.vmem [shape: f32[256,32], index: 1, kind: input, shape index: {}]
  %s2 = inlined_call_operand.vmem [shape: f32[1,256], index: 2, kind: input, shape index: {}]
  %s3 = inlined_call_operand.hbm [shape: f32[8,256], index: 3, kind: output, shape index: {}]
  %s4 = sld [smem:[#allocation0]]
  $region22: #{tpu_custom_call.1} parent=0
    _
  %s6 = ssub.s32 1, %s4
  %s7 = scalar_select 0, %s6, %s4
  $region1: #{tpu_custom_call.1} parent=0
    #allocation2 [shape = 'u8[8192]{0}', space=vmem, size = 0x2000, scoped, tag = 'output window, operand 0, single buffered']
    #allocation3 [shape = 's32[1]{0}', space=sflag, size = 0x4, scoped, tag = 'scoped memory for tpu_custom_call.1']
    %8 = vsyncpa [#allocation3], 0
    // Predicated region
    $region2: #{tpu_custom_call.1} parent=1 // pred_check
      _
    $region3: #{tpu_custom_call.1} parent=1 // pred_check_branch
      %10 = sbr.rel (0) target = $region5
    $region4: #{tpu_custom_call.1} parent=1 // pred_region
      _
    $region5: #{tpu_custom_call.1} parent=1 // pred_fallthru
      _
    // Predicated region
    $region6: #{tpu_custom_call.1} parent=1 // pred_check
      _
    $region7: #{tpu_custom_call.1} parent=1 // pred_check_branch
      %12 = sbr.rel (0) target = $region9
    $region8: #{tpu_custom_call.1} parent=1 // pred_region
      _
    $region9: #{tpu_custom_call.1} parent=1 // pred_fallthru
      _
    // Predicated region
    $region10: #{tpu_custom_call.1} parent=1 // pred_check
      _
    $region11: #{tpu_custom_call.1} parent=1 // pred_check_branch
      %14 = sbr.rel (0) target = $region13
    $region12: #{tpu_custom_call.1} parent=1 // pred_region
      _
    $region13: #{tpu_custom_call.1} parent=1 // pred_fallthru
      _
    %v15 = vld [vmem:[%s0] sm:$0xff]
    %v16 = vld [vmem:[%s1] sm:$0xff]
    %v17 = vld [vmem:[%s1 + $0x8] sm:$0xff]
    %v18 = vld [vmem:[%s1 + $0x10] sm:$0xff]
    %v19 = vld [vmem:[%s1 + $0x18] sm:$0xff]
    %v20 = vld [vmem:[%s1 + $0x20] sm:$0xff]
    %v21 = vld [vmem:[%s1 + $0x28] sm:$0xff]
    %v22 = vld [vmem:[%s1 + $0x30] sm:$0xff]
    %v23 = vld [vmem:[%s1 + $0x38] sm:$0xff]
    %v24 = vld [vmem:[%s1 + $0x40] sm:$0xff]
    %v25 = vld [vmem:[%s1 + $0x48] sm:$0xff]
    %v26 = vld [vmem:[%s1 + $0x50] sm:$0xff]
    %v27 = vld [vmem:[%s1 + $0x58] sm:$0xff]
    %v28 = vld [vmem:[%s1 + $0x60] sm:$0xff]
    %v29 = vld [vmem:[%s1 + $0x68] sm:$0xff]
    %v30 = vld [vmem:[%s1 + $0x70] sm:$0xff]
    %v31 = vld [vmem:[%s1 + $0x78] sm:$0xff]
    %v32 = vld [vmem:[%s1 + $0x80] sm:$0xff]
    %v33 = vld [vmem:[%s1 + $0x88] sm:$0xff]
    %v34 = vld [vmem:[%s1 + $0x90] sm:$0xff]
    %v35 = vld [vmem:[%s1 + $0x98] sm:$0xff]
    %v36 = vld [vmem:[%s1 + $0xa0] sm:$0xff]
    %v37 = vld [vmem:[%s1 + $0xa8] sm:$0xff]
    %v38 = vld [vmem:[%s1 + $0xb0] sm:$0xff]
    %v39 = vld [vmem:[%s1 + $0xb8] sm:$0xff]
    %v40 = vld [vmem:[%s1 + $0xc0] sm:$0xff]
    %v41 = vld [vmem:[%s1 + $0xc8] sm:$0xff]
    %v42 = vld [vmem:[%s1 + $0xd0] sm:$0xff]
    %v43 = vld [vmem:[%s1 + $0xd8] sm:$0xff]
    %v44 = vld [vmem:[%s1 + $0xe0] sm:$0xff]
    %v45 = vld [vmem:[%s1 + $0xe8] sm:$0xff]
    %v46 = vld [vmem:[%s1 + $0xf0] sm:$0xff]
    %v47 = vld [vmem:[%s1 + $0xf8] sm:$0xff]
    %v48 = vld [vmem:[%s2] sm:$0x3]
    %v50 = vlaneseq
    %v51 = vshrl.u32 %v50, 7
    %v52 = vsub.s32 0, %v51
    %v53 = vrot.slane %v48, %v52
    %v54 = vlaneseq
    %v55 = vshrl.u32 %v54, 7
    %v56 = vsub.s32 1, %v55
    %v57 = vrot.slane %v48, %v56
    %vm60 = vcmask 261120
    %v62 = vsel %vm60, %v15, 0
    %v65 = vsel %vm60, %v16, 0
    %v68 = vsel %vm60, %v17, 0
    %v71 = vsel %vm60, %v18, 0
    %v74 = vsel %vm60, %v19, 0
    %v77 = vsel %vm60, %v20, 0
    %v80 = vsel %vm60, %v21, 0
    %v83 = vsel %vm60, %v22, 0
    %v86 = vsel %vm60, %v23, 0
    %v89 = vsel %vm60, %v24, 0
    %v92 = vsel %vm60, %v25, 0
    %v95 = vsel %vm60, %v26, 0
    %v98 = vsel %vm60, %v27, 0
    %v101 = vsel %vm60, %v28, 0
    %v104 = vsel %vm60, %v29, 0
    %v107 = vsel %vm60, %v30, 0
    %v110 = vsel %vm60, %v31, 0
    %v113 = vsel %vm60, %v32, 0
    %v116 = vsel %vm60, %v33, 0
    %v119 = vsel %vm60, %v34, 0
    %v122 = vsel %vm60, %v35, 0
    %v125 = vsel %vm60, %v36, 0
    %v128 = vsel %vm60, %v37, 0
    %v131 = vsel %vm60, %v38, 0
    %v134 = vsel %vm60, %v39, 0
    %v137 = vsel %vm60, %v40, 0
    %v140 = vsel %vm60, %v41, 0
    %v143 = vsel %vm60, %v42, 0
    %v146 = vsel %vm60, %v43, 0
    %v149 = vsel %vm60, %v44, 0
    %v152 = vsel %vm60, %v45, 0
    %v155 = vsel %vm60, %v46, 0
    %v158 = vsel %vm60, %v47, 0
    %160 = vmatprep.subr.mxu0 0.0
    %161 = vmatpush1.xpose.msra.mxu0 %v65
    %162 = vmatprep.subr.mxu0 0.0
    %163 = vmatpush1.xpose.msra.mxu0 %v68
    %164 = vmatprep.subr.mxu0 0.0
    %165 = vmatpush1.xpose.msra.mxu0 %v71
    %166 = vmatprep.subr.mxu0 0.0
    %167 = vmatpush1.xpose.msra.mxu0 %v74
    %168 = vmatprep.subr.mxu0 0.0
    %169 = vmatpush1.xpose.msra.mxu0 %v77
    %170 = vmatprep.subr.mxu0 0.0
    %171 = vmatpush1.xpose.msra.mxu0 %v80
    %172 = vmatprep.subr.mxu0 0.0
    %173 = vmatpush1.xpose.msra.mxu0 %v83
    %174 = vmatprep.subr.mxu0 0.0
    %175 = vmatpush1.xpose.msra.mxu0 %v86
    %176 = vmatprep.subr.mxu0 0.0
    %177 = vmatpush1.xpose.msra.mxu0 %v89
    %178 = vmatprep.subr.mxu0 0.0
    %179 = vmatpush1.xpose.msra.mxu0 %v92
    %180 = vmatprep.subr.mxu0 0.0
    %181 = vmatpush1.xpose.msra.mxu0 %v95
    %182 = vmatprep.subr.mxu0 0.0
    %183 = vmatpush1.xpose.msra.mxu0 %v98
    %184 = vmatprep.subr.mxu0 0.0
    %185 = vmatpush1.xpose.msra.mxu0 %v101
    %186 = vmatprep.subr.mxu0 0.0
    %187 = vmatpush1.xpose.msra.mxu0 %v104
    %188 = vmatprep.subr.mxu0 0.0
    %189 = vmatpush1.xpose.msra.mxu0 %v107
    %190 = vmatprep.subr.mxu0 0.0
    %191 = vmatpush1.xpose.msra.mxu0 %v110
    %192 = vmatprep.subr.mxu0 0.0
    %193 = vmatpush1.xpose.msra.mxu0 %v113
    %194 = vmatprep.subr.mxu0 0.0
    %195 = vmatpush1.xpose.msra.mxu0 %v116
    %196 = vmatprep.subr.mxu0 0.0
    %197 = vmatpush1.xpose.msra.mxu0 %v119
    %198 = vmatprep.subr.mxu0 0.0
    %199 = vmatpush1.xpose.msra.mxu0 %v122
    %200 = vmatprep.subr.mxu0 0.0
    %201 = vmatpush1.xpose.msra.mxu0 %v125
    %202 = vmatprep.subr.mxu0 0.0
    %203 = vmatpush1.xpose.msra.mxu0 %v128
    %204 = vmatprep.subr.mxu0 0.0
    %205 = vmatpush1.xpose.msra.mxu0 %v131
    %206 = vmatprep.subr.mxu0 0.0
    %207 = vmatpush1.xpose.msra.mxu0 %v134
    %208 = vmatprep.subr.mxu0 0.0
    %209 = vmatpush1.xpose.msra.mxu0 %v137
    %210 = vmatprep.subr.mxu0 0.0
    %211 = vmatpush1.xpose.msra.mxu0 %v140
    %212 = vmatprep.subr.mxu0 0.0
    %213 = vmatpush1.xpose.msra.mxu0 %v143
    %214 = vmatprep.subr.mxu0 0.0
    %215 = vmatpush1.xpose.msra.mxu0 %v146
    %216 = vmatprep.subr.mxu0 0.0
    %217 = vmatpush1.xpose.msra.mxu0 %v149
    %218 = vmatprep.subr.mxu0 0.0
    %219 = vmatpush1.xpose.msra.mxu0 %v152
    %220 = vmatprep.subr.mxu0 0.0
    %221 = vmatpush1.xpose.msra.mxu0 %v155
    %222 = vmatprep.subr.mxu0 0.0
    %223 = vmatpush1.xpose.msra.mxu0 %v158
    %224 = vmatprep.mubr.f32.mxu0 0.0
    %225 = vmatmul.mubr.f32.gmra.mrb[0].mxu0 %v62
    %v226 = vpop.f32.mrb[0].mxu0
    %v227 = vadd.f32 %v53, %v226
    %v228 = vpop.f32.mrb[0].mxu0
    %v229 = vadd.f32 %v57, %v228
    %230 = vdwg.mxu0
    %v231 = vmax.f32 %v227, 0.0
    %v232 = vmax.f32 %v229, 0.0
    %233 = vst [vmem:[#allocation2] sm:$0xff] %v231
    %234 = vst [vmem:[#allocation2 + $0x8] sm:$0xff] %v232
    // Predicated region
    $region14: #{tpu_custom_call.1} parent=1 // pred_check
      _
    $region15: #{tpu_custom_call.1} parent=1 // pred_check_branch
      %236 = sbr.rel (0) target = $region17
    $region16: #{tpu_custom_call.1} parent=1 // pred_region
      %s238 = ssub.s32 256, 256
      %239 = vsyncadd [#allocation3], %s238
      %s241 = sshll.u32 [#allocation2], 4
      %s242 = int_to_ptr.vmem [resolvable:$true] %s241
      %244 = dma.vmem_to_hbm [thread:$0]  %s242, 256, %s3, [#allocation3]
    $region17: #{tpu_custom_call.1} parent=1 // pred_fallthru
      _
    // Predicated region
    $region18: #{tpu_custom_call.1} parent=1 // pred_check
      _
    $region19: #{tpu_custom_call.1} parent=1 // pred_check_branch
      %246 = sbr.rel (0) target = $region21
    $region20: #{tpu_custom_call.1} parent=1 // pred_region
      %247 = dma.done [#allocation3], 256
    $region21: #{tpu_custom_call.1} parent=1 // pred_fallthru
      _
    %248 = vsyncpa [#allocation3], 1

</llo_original>
